<compile_context>
chip_gen: v6e
topology: v6e:2x2x1
jax: 0.10.0
libtpu: 0.0.40
codegen_flags: <defaults>
</compile_context>

<pallas_src>
import jax
import jax.numpy as jnp
from jax.experimental import pallas as pl
from jax.experimental.pallas import tpu as pltpu

# ---------------- config (small synthetic shapes) ----------------
B = 2            # batch
C_IN = 4         # input channels
H = W = 16       # spatial
C_MID = 32       # conv channels (logical)
DIM = 32         # feature dim (MoCo `dim`, logical)
K_QUEUE = 64     # queue size (MoCo `K`), K % B == 0
LABEL_Q = 256    # label_labeled_queue size (137726 in the original)
M_MOMENTUM = 0.999
T = 0.07         # temperature (kept for parity; unused in this forward)

# lane-dense padded sizes (multiples of 128)
LANE = 128
K_IM2COL = 9 * C_IN          # 36
K_PAD = 128                  # padded im2col contraction dim
C_MID_PAD = 128              # padded conv channels
DIM_PAD = 128                # padded feature dim
HW = H * W
BHW = B * H * W


# ---------------- encoder kernel: one grid step = one (encoder, image) pair ----
def encoder_kernel(patch_ref, wc_ref, bc_ref, wf_ref, bf_ref, out_ref):
    # 3x3 conv folded into a single im2col MXU matmul:
    # (BHW, K_PAD) @ (K_PAD, C_MID_PAD), f32 accumulation.
    acc = jnp.dot(patch_ref[0], wc_ref[0],
                  preferred_element_type=jnp.float32)            # (BHW, C_MID_PAD) f32
    acc = jnp.maximum(acc + bc_ref[0], 0.0)                      # bias + ReLU (VPU, f32)

    # Global average pool as an f32 VPU reduction over the spatial axis
    # (no pooling-matrix matmul, no f32->bf16 cast of the activations).
    pooled = jnp.sum(acc.reshape(B, HW, C_MID_PAD), axis=1) * (1.0 / HW)  # (B, C_MID_PAD)

    # FC head -> (B, DIM_PAD).
    y = jnp.dot(pooled.astype(jnp.bfloat16), wf_ref[0],
                preferred_element_type=jnp.float32) + bf_ref[0]

    # L2 normalize along the feature dim; padded cols of wf/bf are zero so the
    # 128-lane norm equals the logical DIM norm.  rsqrt -> EUP slot (free-ish).
    inv = jax.lax.rsqrt(jnp.maximum(jnp.sum(y * y, axis=1, keepdims=True), 1e-24))
    out_ref[0] = y * inv


# ---------------- wrapper glue: im2col, padding, stacking ----------------
def _im2col(x_nchw):
    # NCHW -> NHWC, zero pad spatially by 1, gather the 9 conv taps along channels.
    # TODO(synk): could be pulled inside the kernel to avoid the (BHW, K_PAD)
    #             HBM intermediate; modest win at these shapes so kept as glue.
    x = jnp.transpose(x_nchw, (0, 2, 3, 1)).astype(jnp.float32)
    x = jnp.pad(x, ((0, 0), (1, 1), (1, 1), (0, 0)))
    cols = []
    for kh in range(3):
        for kw in range(3):
            cols.append(x[:, kh:kh + H, kw:kw + W, :])
    p = jnp.concatenate(cols, axis=-1).reshape(BHW, K_IM2COL)
    p = jnp.pad(p, ((0, 0), (0, K_PAD - K_IM2COL)))
    return p.astype(jnp.bfloat16)                                # (BHW, K_PAD)


def _pad_params(params):
    # conv weight (3,3,Cin,Cmid) -> (9*Cin, Cmid), matches im2col tap ordering
    wc = params["conv_w"].reshape(K_IM2COL, C_MID)
    wc = jnp.pad(wc, ((0, K_PAD - K_IM2COL), (0, C_MID_PAD - C_MID))).astype(jnp.bfloat16)
    bc = jnp.pad(params["conv_b"].reshape(1, C_MID),
                 ((0, 0), (0, C_MID_PAD - C_MID))).astype(jnp.float32)
    wf = jnp.pad(params["fc_w"],
                 ((0, C_MID_PAD - C_MID), (0, DIM_PAD - DIM))).astype(jnp.bfloat16)
    bf = jnp.pad(params["fc_b"].reshape(1, DIM),
                 ((0, 0), (0, DIM_PAD - DIM))).astype(jnp.float32)
    return {"wc": wc, "bc": bc, "wf": wf, "bf": bf}


def encode_pair(params_q, params_k, im_q, im_k):
    """Run the q-encoder on im_q and the (updated) k-encoder on im_k in ONE call."""
    pq = _pad_params(params_q)
    pk = _pad_params(params_k)

    patches = jnp.stack([_im2col(im_q), _im2col(im_k)], axis=0)      # (2, BHW, K_PAD) bf16
    wc = jnp.stack([pq["wc"], pk["wc"]], axis=0)                     # (2, K_PAD, C_MID_PAD)
    bc = jnp.stack([pq["bc"], pk["bc"]], axis=0)                     # (2, 1, C_MID_PAD)
    wf = jnp.stack([pq["wf"], pk["wf"]], axis=0)                     # (2, C_MID_PAD, DIM_PAD)
    bf = jnp.stack([pq["bf"], pk["bf"]], axis=0)                     # (2, 1, DIM_PAD)

    out = pl.pallas_call(
        encoder_kernel,
        out_shape=jax.ShapeDtypeStruct((2, B, DIM_PAD), jnp.float32),
        grid=(2,),
        in_specs=[
            pl.BlockSpec((1, BHW, K_PAD), lambda e: (e, 0, 0)),
            pl.BlockSpec((1, K_PAD, C_MID_PAD), lambda e: (e, 0, 0)),
            pl.BlockSpec((1, 1, C_MID_PAD), lambda e: (e, 0, 0)),
            pl.BlockSpec((1, C_MID_PAD, DIM_PAD), lambda e: (e, 0, 0)),
            pl.BlockSpec((1, 1, DIM_PAD), lambda e: (e, 0, 0)),
        ],
        out_specs=pl.BlockSpec((1, B, DIM_PAD), lambda e: (e, 0, 0)),
        compiler_params=pltpu.CompilerParams(dimension_semantics=("parallel",)),
    )(patches, wc, bc, wf, bf)

    q = out[0, :, :DIM]
    k = out[1, :, :DIM]
    return q, k


# ---------------- momentum update: plain fused XLA elementwise ----------------
def momentum_update(params_q, params_k):
    # ~12 KB of elementwise f32; a dedicated pallas_call would be dominated by
    # launch + reshape glue, so let XLA fuse this into the surrounding jit.
    return jax.tree_util.tree_map(
        lambda pq, pk: pk * M_MOMENTUM + pq * (1.0 - M_MOMENTUM),
        params_q, params_k)


# ---------------- MoCo forward (functional state) ----------------
def moco_forward(params_q, params_k, state, im_q, im_k, index):
    # Momentum update of the key encoder (torch: under no_grad, before the key
    # forward).  encoder_q's params are unchanged in forward, so running the
    # update first is equivalent and lets both encodes share one pallas_call.
    params_k = momentum_update(params_q, params_k)

    # q = normalize(encoder_q(im_q)); k = normalize(encoder_k(im_k))
    q, k = encode_pair(params_q, params_k, im_q, im_k)

    # label gathers (PyTorch negative indices wrap -> mode="wrap")
    labels = jnp.take(state["label_labeled_queue"], index, mode="wrap")
    queue_l = jnp.take(state["label_labeled_queue"], state["index_queue"], mode="wrap")

    # features = cat(q, k, queue.T); target = cat(labels, labels, queue_l)
    features = jnp.concatenate([q, k, state["queue"].T], axis=0)
    target = jnp.concatenate([labels, labels, queue_l], axis=0)

    # dequeue & enqueue (state update, glue).  Safe because K_QUEUE % B == 0.
    ptr = state["queue_ptr"]
    new_queue = jax.lax.dynamic_update_slice(state["queue"], k.T, (jnp.int32(0), ptr))
    new_index_queue = jax.lax.dynamic_update_slice(state["index_queue"], index, (ptr,))
    new_state = dict(
        state,
        queue=new_queue,
        index_queue=new_index_queue,
        queue_ptr=(ptr + im_q.shape[0]) % K_QUEUE,
    )
    return features, target, params_k, new_state


# ---------------- deterministic init ----------------
def init_params(key):
    k1, k2 = jax.random.split(key, 2)
    return {
        "conv_w": jax.random.normal(k1, (3, 3, C_IN, C_MID), jnp.float32) * 0.1,
        "conv_b": jnp.zeros((C_MID,), jnp.float32),
        "fc_w": jax.random.normal(k2, (C_MID, DIM), jnp.float32) * 0.1,
        "fc_b": jnp.zeros((DIM,), jnp.float32),
    }


if __name__ == "__main__":
    key = jax.random.PRNGKey(0)
    kq, kqueue, kimq, kimk = jax.random.split(key, 4)

    params_q = init_params(kq)
    # key encoder initialized as a copy of the query encoder (as in __init__)
    params_k = jax.tree_util.tree_map(lambda a: a + 0.0, params_q)

    queue = jax.random.normal(kqueue, (DIM, K_QUEUE), jnp.float32)
    queue = queue / jnp.maximum(
        jnp.sqrt(jnp.sum(queue * queue, axis=0, keepdims=True)), 1e-12)

    state = {
        "queue": queue,
        "index_queue": -jnp.ones((K_QUEUE,), jnp.int32),
        "label_labeled_queue": -jnp.ones((LABEL_Q,), jnp.int32),
        "queue_ptr": jnp.zeros((), jnp.int32),
    }

    # simulate init_label_information(index, label) for the batch indices
    index = jnp.array([3, 17], dtype=jnp.int32)
    batch_labels = jnp.array([1, 5], dtype=jnp.int32)
    state["label_labeled_queue"] = state["label_labeled_queue"].at[index].set(batch_labels)

    im_q = jax.random.normal(kimq, (B, C_IN, H, W), jnp.float32)
    im_k = jax.random.normal(kimk, (B, C_IN, H, W), jnp.float32)

    features, target, params_k, state = jax.jit(moco_forward)(
        params_q, params_k, state, im_q, im_k, index)
    jax.block_until_ready((features, target, state))

    assert features.shape == (2 * B + K_QUEUE, DIM)
    assert target.shape == (2 * B + K_QUEUE,)
    # q and k rows are unit-norm
    assert bool(jnp.allclose(jnp.linalg.norm(features[: 2 * B], axis=1), 1.0, atol=1e-3))
    print("KERNEL_OK")
</pallas_src>

<mosaic_0001>
module attributes {stable_mosaic.version = 11 : i64} {
  func.func @encoder_kernel(%arg0: i32, %arg1: memref<1x512x128xbf16, #tpu.memory_space<vmem>>, %arg2: memref<1x128x128xbf16, #tpu.memory_space<vmem>>, %arg3: memref<1x1x128xf32, #tpu.memory_space<vmem>>, %arg4: memref<1x128x128xbf16, #tpu.memory_space<vmem>>, %arg5: memref<1x1x128xf32, #tpu.memory_space<vmem>>, %arg6: memref<1x2x128xf32, #tpu.memory_space<vmem>>) attributes {dimension_semantics = [#tpu.dimension_semantics<parallel>], iteration_bounds = array<i64: 2>, scalar_prefetch = 0 : i64, scratch_operands = 0 : i64, tpu.core_type = #tpu.core_type<tc>, window_params = [{transform_indices = @transform_0, window_bounds = array<i64: 1, 512, 128>}, {transform_indices = @transform_1, window_bounds = array<i64: 1, 128, 128>}, {transform_indices = @transform_2, window_bounds = array<i64: 1, 1, 128>}, {transform_indices = @transform_3, window_bounds = array<i64: 1, 128, 128>}, {transform_indices = @transform_4, window_bounds = array<i64: 1, 1, 128>}, {transform_indices = @transform_5, window_bounds = array<i64: 1, 2, 128>}]} {
    %c0 = arith.constant 0 : index
    %c0_0 = arith.constant 0 : index
    %c0_1 = arith.constant 0 : index
    %0 = vector.load %arg1[%c0, %c0_0, %c0_1] : memref<1x512x128xbf16, #tpu.memory_space<vmem>>, vector<1x512x128xbf16>
    %1 = vector.shape_cast %0 : vector<1x512x128xbf16> to vector<512x128xbf16>
    %c0_2 = arith.constant 0 : index
    %c0_3 = arith.constant 0 : index
    %c0_4 = arith.constant 0 : index
    %2 = vector.load %arg2[%c0_2, %c0_3, %c0_4] : memref<1x128x128xbf16, #tpu.memory_space<vmem>>, vector<1x128x128xbf16>
    %3 = vector.shape_cast %2 : vector<1x128x128xbf16> to vector<128x128xbf16>
    %cst = arith.constant dense<0.000000e+00> : vector<512x128xf32>
    %4 = tpu.matmul %1, %3, %cst {dimension_numbers = #tpu.dot_dimension_numbers<[1], [0], [0], [1], [0, 0, 1, 1], [], []>} : vector<512x128xbf16>, vector<128x128xbf16>, vector<512x128xf32> -> vector<512x128xf32>
    %c0_5 = arith.constant 0 : index
    %c0_6 = arith.constant 0 : index
    %c0_7 = arith.constant 0 : index
    %5 = vector.load %arg3[%c0_5, %c0_6, %c0_7] : memref<1x1x128xf32, #tpu.memory_space<vmem>>, vector<1x1x128xf32>
    %6 = vector.shape_cast %5 : vector<1x1x128xf32> to vector<1x128xf32>
    %7 = vector.broadcast %6 : vector<1x128xf32> to vector<512x128xf32>
    %8 = arith.addf %4, %7 : vector<512x128xf32>
    %cst_8 = arith.constant 0.000000e+00 : f32
    %9 = vector.broadcast %cst_8 : f32 to vector<512x128xf32>
    %10 = arith.maximumf %8, %9 : vector<512x128xf32>
    %11 = vector.shape_cast %10 : vector<512x128xf32> to vector<2x256x128xf32>
    %cst_9 = arith.constant dense<0.000000e+00> : vector<2x128xf32>
    %12 = vector.multi_reduction <add>, %11, %cst_9 [1] : vector<2x256x128xf32> to vector<2x128xf32>
    %cst_10 = arith.constant 3.906250e-03 : f32
    %13 = vector.broadcast %cst_10 : f32 to vector<2x128xf32>
    %14 = arith.mulf %12, %13 : vector<2x128xf32>
    %15 = arith.truncf %14 : vector<2x128xf32> to vector<2x128xbf16>
    %c0_11 = arith.constant 0 : index
    %c0_12 = arith.constant 0 : index
    %c0_13 = arith.constant 0 : index
    %16 = vector.load %arg4[%c0_11, %c0_12, %c0_13] : memref<1x128x128xbf16, #tpu.memory_space<vmem>>, vector<1x128x128xbf16>
    %17 = vector.shape_cast %16 : vector<1x128x128xbf16> to vector<128x128xbf16>
    %cst_14 = arith.constant dense<0.000000e+00> : vector<2x128xf32>
    %18 = tpu.matmul %15, %17, %cst_14 {dimension_numbers = #tpu.dot_dimension_numbers<[1], [0], [0], [1], [0, 0, 1, 1], [], []>} : vector<2x128xbf16>, vector<128x128xbf16>, vector<2x128xf32> -> vector<2x128xf32>
    %c0_15 = arith.constant 0 : index
    %c0_16 = arith.constant 0 : index
    %c0_17 = arith.constant 0 : index
    %19 = vector.load %arg5[%c0_15, %c0_16, %c0_17] : memref<1x1x128xf32, #tpu.memory_space<vmem>>, vector<1x1x128xf32>
    %20 = vector.shape_cast %19 : vector<1x1x128xf32> to vector<1x128xf32>
    %21 = vector.broadcast %20 : vector<1x128xf32> to vector<2x128xf32>
    %22 = arith.addf %18, %21 : vector<2x128xf32>
    %23 = arith.mulf %22, %22 : vector<2x128xf32>
    %cst_18 = arith.constant dense<0.000000e+00> : vector<2xf32>
    %24 = vector.multi_reduction <add>, %23, %cst_18 [1] : vector<2x128xf32> to vector<2xf32>
    %25 = vector.shape_cast %24 : vector<2xf32> to vector<2x1xf32>
    %cst_19 = arith.constant 1.000000e-24 : f32
    %26 = vector.broadcast %cst_19 : f32 to vector<2x1xf32>
    %27 = arith.maximumf %25, %26 : vector<2x1xf32>
    %28 = math.rsqrt %27 : vector<2x1xf32>
    %29 = vector.broadcast %28 : vector<2x1xf32> to vector<2x128xf32>
    %30 = arith.mulf %22, %29 : vector<2x128xf32>
    %c0_20 = arith.constant 0 : index
    %c0_21 = arith.constant 0 : index
    %c0_22 = arith.constant 0 : index
    %31 = vector.load %arg6[%c0_20, %c0_21, %c0_22] : memref<1x2x128xf32, #tpu.memory_space<vmem>>, vector<1x2x128xf32>
    %32 = vector.shape_cast %31 : vector<1x2x128xf32> to vector<2x128xf32>
    %33 = vector.shape_cast %30 : vector<2x128xf32> to vector<1x2x128xf32>
    tpu.vector_store %arg6[%c0_20, %c0_21, %c0_22], %33 {strides = array<i32>} : memref<1x2x128xf32, #tpu.memory_space<vmem>>, vector<1x2x128xf32>,
    return
  }
  func.func @transform_0(%arg0: i32) -> (i32, i32, i32) {
    %c0_i32 = arith.constant 0 : i32
    %c0_i32_0 = arith.constant 0 : i32
    %c0_i32_1 = arith.constant 0 : i32
    return %arg0, %c0_i32, %c0_i32_0 : i32, i32, i32
  }
  func.func @transform_1(%arg0: i32) -> (i32, i32, i32) {
    %c0_i32 = arith.constant 0 : i32
    %c0_i32_0 = arith.constant 0 : i32
    %c0_i32_1 = arith.constant 0 : i32
    return %arg0, %c0_i32, %c0_i32_0 : i32, i32, i32
  }
  func.func @transform_2(%arg0: i32) -> (i32, i32, i32) {
    %c0_i32 = arith.constant 0 : i32
    %c0_i32_0 = arith.constant 0 : i32
    %c0_i32_1 = arith.constant 0 : i32
    return %arg0, %c0_i32, %c0_i32_0 : i32, i32, i32
  }
  func.func @transform_3(%arg0: i32) -> (i32, i32, i32) {
    %c0_i32 = arith.constant 0 : i32
    %c0_i32_0 = arith.constant 0 : i32
    %c0_i32_1 = arith.constant 0 : i32
    return %arg0, %c0_i32, %c0_i32_0 : i32, i32, i32
  }
  func.func @transform_4(%arg0: i32) -> (i32, i32, i32) {
    %c0_i32 = arith.constant 0 : i32
    %c0_i32_0 = arith.constant 0 : i32
    %c0_i32_1 = arith.constant 0 : i32
    return %arg0, %c0_i32, %c0_i32_0 : i32, i32, i32
  }
  func.func @transform_5(%arg0: i32) -> (i32, i32, i32) {
    %c0_i32 = arith.constant 0 : i32
    %c0_i32_0 = arith.constant 0 : i32
    %c0_i32_1 = arith.constant 0 : i32
    return %arg0, %c0_i32, %c0_i32_0 : i32, i32, i32
  }
}

</mosaic_0001>

<llo_original>
// kernel: moco_forward.1
$region0: #{moco_forward.1}
  #allocation0 [shape = 'u32[]', space=smem, size = 0x4, offset = 0x4, fixed_abs, tag = 'smem constant byte address 0x4 - core index']
  #allocation1 [shape = 'u32[144,128]{1,0:T(1,128)}', space=vmem, size = 0x12000, scoped, tag = 'internal scratch']
  %s0 = inlined_call_operand.vmem [shape: bf16[2,512,128], index: 0, kind: input, shape index: {}]
  %s1 = inlined_call_operand.vmem [shape: bf16[2,128,128], index: 1, kind: input, shape index: {}]
  %s2 = inlined_call_operand.vmem [shape: f32[2,1,128], index: 2, kind: input, shape index: {}]
  %s3 = inlined_call_operand.vmem [shape: bf16[2,128,128], index: 3, kind: input, shape index: {}]
  %s4 = inlined_call_operand.vmem [shape: f32[2,1,128], index: 4, kind: input, shape index: {}]
  %s5 = inlined_call_operand.vmem [shape: f32[2,2,128], index: 5, kind: output, shape index: {}]
  %s6 = sld [smem:[#allocation0]]
  $region53: #{moco_forward.1} parent=0
    _
  %s8 = ssub.s32 1, %s6
  %s9 = scalar_select 0, %s8, %s6
  loop: start=0, step=1, limit=4
  $region2: #{moco_forward.1} parent=0 // loop_pre_header
    _
  $region3: #{moco_forward.1} parent=0 // loop_header
    %s11 = sphi 0, %s15
    %p12 = scmp.ge.s32.totalorder %s11, 4
    %s21 = sphi 0, %s23
    %s24 = sphi 0, %s21
    %s25 = sphi 0, %s24
    %s41 = sphi 0, %s25
    %s47 = sphi 0, %s49
    %s50 = sphi 0, %s47
    %s51 = sphi 0, %s50
    %s67 = sphi 0, %s51
    %s73 = sphi 0, %s75
    %s76 = sphi 0, %s73
    %s77 = sphi 0, %s76
    %s93 = sphi 0, %s77
    %s99 = sphi 0, %s101
    %s102 = sphi 0, %s99
    %s103 = sphi 0, %s102
    %s119 = sphi 0, %s103
    %s125 = sphi 0, %s127
    %s128 = sphi 0, %s125
    %s129 = sphi 0, %s128
    %s145 = sphi 0, %s129
    %s151 = sphi 0, %s153
    %s154 = sphi 0, %s151
    %s155 = sphi 0, %s154
    %s171 = sphi 0, %s155
  $region4: #{moco_forward.1} parent=0 // loop_header_branch
    %14 = sbr.rel (%p12) target = $region8
  $region5: #{moco_forward.1} parent=0 // loop_body
    %s16 = ssub.s32 %s11, 1
    %s17 = ssub.s32 %s11, 2
    %s18 = sadd.s32 %s11, 1
    %s19 = ssub.s32 %s11, %s18
    %p20 = scmp.eq.s32.totalorder %s19, 0
    %s22 = sadd.s32 %s21, 1
    %s23 = scalar_select %p20, %s21, %s22
    %p26 = pneg %p20
    %p27 = scmp.eq.s32.totalorder %s11, 1
    %p28 = por %p26, %p27
    %p29 = scmp.ne.s32.totalorder %s21, %s24
    %p30 = scmp.eq.s32.totalorder %s11, 0
    %p31 = por %p29, %p30
    %p32 = scmp.ne.s32.totalorder %s21, %s24
    %p33 = scmp.eq.s32.totalorder %s16, 1
    %p34 = por %p32, %p33
    %p35 = scmp.ne.s32.totalorder %s24, %s25
    %p36 = scmp.eq.s32.totalorder %s16, 0
    %p37 = por %p35, %p36
    %p38 = scmp.ne.s32.totalorder %s24, %s25
    %p39 = scmp.eq.s32.totalorder %s17, 1
    %p40 = por %p38, %p39
    %p42 = scmp.ne.s32.totalorder %s25, %s41
    %p43 = scmp.eq.s32.totalorder %s17, 0
    %p44 = por %p42, %p43
    %s45 = ssub.s32 %s11, %s18
    %p46 = scmp.eq.s32.totalorder %s45, 0
    %s48 = sadd.s32 %s47, 1
    %s49 = scalar_select %p46, %s47, %s48
    %p52 = pneg %p46
    %p53 = scmp.eq.s32.totalorder %s11, 1
    %p54 = por %p52, %p53
    %p55 = scmp.ne.s32.totalorder %s47, %s50
    %p56 = scmp.eq.s32.totalorder %s11, 0
    %p57 = por %p55, %p56
    %p58 = scmp.ne.s32.totalorder %s47, %s50
    %p59 = scmp.eq.s32.totalorder %s16, 1
    %p60 = por %p58, %p59
    %p61 = scmp.ne.s32.totalorder %s50, %s51
    %p62 = scmp.eq.s32.totalorder %s16, 0
    %p63 = por %p61, %p62
    %p64 = scmp.ne.s32.totalorder %s50, %s51
    %p65 = scmp.eq.s32.totalorder %s17, 1
    %p66 = por %p64, %p65
    %p68 = scmp.ne.s32.totalorder %s51, %s67
    %p69 = scmp.eq.s32.totalorder %s17, 0
    %p70 = por %p68, %p69
    %s71 = ssub.s32 %s11, %s18
    %p72 = scmp.eq.s32.totalorder %s71, 0
    %s74 = sadd.s32 %s73, 1
    %s75 = scalar_select %p72, %s73, %s74
    %p78 = pneg %p72
    %p79 = scmp.eq.s32.totalorder %s11, 1
    %p80 = por %p78, %p79
    %p81 = scmp.ne.s32.totalorder %s73, %s76
    %p82 = scmp.eq.s32.totalorder %s11, 0
    %p83 = por %p81, %p82
    %p84 = scmp.ne.s32.totalorder %s73, %s76
    %p85 = scmp.eq.s32.totalorder %s16, 1
    %p86 = por %p84, %p85
    %p87 = scmp.ne.s32.totalorder %s76, %s77
    %p88 = scmp.eq.s32.totalorder %s16, 0
    %p89 = por %p87, %p88
    %p90 = scmp.ne.s32.totalorder %s76, %s77
    %p91 = scmp.eq.s32.totalorder %s17, 1
    %p92 = por %p90, %p91
    %p94 = scmp.ne.s32.totalorder %s77, %s93
    %p95 = scmp.eq.s32.totalorder %s17, 0
    %p96 = por %p94, %p95
    %s97 = ssub.s32 %s11, %s18
    %p98 = scmp.eq.s32.totalorder %s97, 0
    %s100 = sadd.s32 %s99, 1
    %s101 = scalar_select %p98, %s99, %s100
    %p104 = pneg %p98
    %p105 = scmp.eq.s32.totalorder %s11, 1
    %p106 = por %p104, %p105
    %p107 = scmp.ne.s32.totalorder %s99, %s102
    %p108 = scmp.eq.s32.totalorder %s11, 0
    %p109 = por %p107, %p108
    %p110 = scmp.ne.s32.totalorder %s99, %s102
    %p111 = scmp.eq.s32.totalorder %s16, 1
    %p112 = por %p110, %p111
    %p113 = scmp.ne.s32.totalorder %s102, %s103
    %p114 = scmp.eq.s32.totalorder %s16, 0
    %p115 = por %p113, %p114
    %p116 = scmp.ne.s32.totalorder %s102, %s103
    %p117 = scmp.eq.s32.totalorder %s17, 1
    %p118 = por %p116, %p117
    %p120 = scmp.ne.s32.totalorder %s103, %s119
    %p121 = scmp.eq.s32.totalorder %s17, 0
    %p122 = por %p120, %p121
    %s123 = ssub.s32 %s11, %s18
    %p124 = scmp.eq.s32.totalorder %s123, 0
    %s126 = sadd.s32 %s125, 1
    %s127 = scalar_select %p124, %s125, %s126
    %p130 = pneg %p124
    %p131 = scmp.eq.s32.totalorder %s11, 1
    %p132 = por %p130, %p131
    %p133 = scmp.ne.s32.totalorder %s125, %s128
    %p134 = scmp.eq.s32.totalorder %s11, 0
    %p135 = por %p133, %p134
    %p136 = scmp.ne.s32.totalorder %s125, %s128
    %p137 = scmp.eq.s32.totalorder %s16, 1
    %p138 = por %p136, %p137
    %p139 = scmp.ne.s32.totalorder %s128, %s129
    %p140 = scmp.eq.s32.totalorder %s16, 0
    %p141 = por %p139, %p140
    %p142 = scmp.ne.s32.totalorder %s128, %s129
    %p143 = scmp.eq.s32.totalorder %s17, 1
    %p144 = por %p142, %p143
    %p146 = scmp.ne.s32.totalorder %s129, %s145
    %p147 = scmp.eq.s32.totalorder %s17, 0
    %p148 = por %p146, %p147
    %s149 = ssub.s32 %s11, %s18
    %p150 = scmp.eq.s32.totalorder %s149, 0
    %s152 = sadd.s32 %s151, 1
    %s153 = scalar_select %p150, %s151, %s152
    %p156 = pneg %p150
    %p157 = scmp.eq.s32.totalorder %s11, 1
    %p158 = por %p156, %p157
    %p159 = scmp.ne.s32.totalorder %s151, %s154
    %p160 = scmp.eq.s32.totalorder %s11, 0
    %p161 = por %p159, %p160
    %p162 = scmp.ne.s32.totalorder %s151, %s154
    %p163 = scmp.eq.s32.totalorder %s16, 1
    %p164 = por %p162, %p163
    %p165 = scmp.ne.s32.totalorder %s154, %s155
    %p166 = scmp.eq.s32.totalorder %s16, 0
    %p167 = por %p165, %p166
    %p168 = scmp.ne.s32.totalorder %s154, %s155
    %p169 = scmp.eq.s32.totalorder %s17, 1
    %p170 = por %p168, %p169
    %p172 = scmp.ne.s32.totalorder %s155, %s171
    %p173 = scmp.eq.s32.totalorder %s17, 0
    %p174 = por %p172, %p173
    %p175 = scmp.le.s32.totalorder 1, %s11
    %p176 = scmp.lt.s32.totalorder %s11, 3
    %p177 = pnand %p175, %p176
    %p178 = pneg %p177
    // Predicated region
    $region9: #{moco_forward.1} parent=5 // pred_check
      _
    $region10: #{moco_forward.1} parent=5 // pred_check_branch
      %180 = sbr.rel (%p177) target = $region12
    $region11: #{moco_forward.1} parent=5 // pred_region
      %s181 = ssub.s32 %s11, 1
    $region12: #{moco_forward.1} parent=5 // pred_fallthru
      _
    %p182 = scmp.lt.s32.totalorder %s11, 2
    // Predicated region
    $region13: #{moco_forward.1} parent=5 // pred_check
      %p183 = pneg %p182
    $region14: #{moco_forward.1} parent=5 // pred_check_branch
      %185 = sbr.rel (%p183) target = $region16
    $region15: #{moco_forward.1} parent=5 // pred_region
      // Predicated region
      $region17: #{moco_forward.1} parent=15 // pred_check
        %p186 = pneg %p31
      $region18: #{moco_forward.1} parent=15 // pred_check_branch
        %188 = sbr.rel (%p186) target = $region20
      $region19: #{moco_forward.1} parent=15 // pred_region
        %p189 = scmp.lt.s32.totalorder %s11, 1
        %s190 = scalar_select %p189, %s11, 1
        %s191 = smul.addr %s190, 64
        %s192 = smul.addr %s191, 4
        %s193 = scalar_lea.vmem %s0, %s192
      $region20: #{moco_forward.1} parent=15 // pred_fallthru
        _
      // Predicated region
      $region21: #{moco_forward.1} parent=15 // pred_check
        %p194 = pneg %p57
      $region22: #{moco_forward.1} parent=15 // pred_check_branch
        %196 = sbr.rel (%p194) target = $region24
      $region23: #{moco_forward.1} parent=15 // pred_region
        %p197 = scmp.lt.s32.totalorder %s11, 1
        %s198 = scalar_select %p197, %s11, 1
        %s199 = smul.addr %s198, 16
        %s200 = smul.addr %s199, 4
        %s201 = scalar_lea.vmem %s1, %s200
      $region24: #{moco_forward.1} parent=15 // pred_fallthru
        _
      // Predicated region
      $region25: #{moco_forward.1} parent=15 // pred_check
        %p202 = pneg %p83
      $region26: #{moco_forward.1} parent=15 // pred_check_branch
        %204 = sbr.rel (%p202) target = $region28
      $region27: #{moco_forward.1} parent=15 // pred_region
        %p205 = scmp.lt.s32.totalorder %s11, 1
        %s206 = scalar_select %p205, %s11, 1
        %s207 = scalar_lea.vmem %s2, %s206
      $region28: #{moco_forward.1} parent=15 // pred_fallthru
        _
      // Predicated region
      $region29: #{moco_forward.1} parent=15 // pred_check
        %p208 = pneg %p109
      $region30: #{moco_forward.1} parent=15 // pred_check_branch
        %210 = sbr.rel (%p208) target = $region32
      $region31: #{moco_forward.1} parent=15 // pred_region
        %p211 = scmp.lt.s32.totalorder %s11, 1
        %s212 = scalar_select %p211, %s11, 1
        %s213 = smul.addr %s212, 16
        %s214 = smul.addr %s213, 4
        %s215 = scalar_lea.vmem %s3, %s214
      $region32: #{moco_forward.1} parent=15 // pred_fallthru
        _
      // Predicated region
      $region33: #{moco_forward.1} parent=15 // pred_check
        %p216 = pneg %p135
      $region34: #{moco_forward.1} parent=15 // pred_check_branch
        %218 = sbr.rel (%p216) target = $region36
      $region35: #{moco_forward.1} parent=15 // pred_region
        %p219 = scmp.lt.s32.totalorder %s11, 1
        %s220 = scalar_select %p219, %s11, 1
        %s221 = scalar_lea.vmem %s4, %s220
      $region36: #{moco_forward.1} parent=15 // pred_fallthru
        _
    $region16: #{moco_forward.1} parent=5 // pred_fallthru
      _
    %p222 = scmp.le.s32.totalorder 1, %s11
    %p223 = scmp.lt.s32.totalorder %s11, 3
    %p224 = pnand %p222, %p223
    %p225 = pneg %p224
    // Predicated region
    $region37: #{moco_forward.1} parent=5 // pred_check
      _
    $region38: #{moco_forward.1} parent=5 // pred_check_branch
      %227 = sbr.rel (%p224) target = $region40
    $region39: #{moco_forward.1} parent=5 // pred_region
      %s228 = ssub.s32 %s11, 1
      %p229 = scmp.lt.s32.totalorder %s16, 1
      %s230 = scalar_select %p229, %s16, 1
      %s231 = smul.addr %s230, 64
      %s232 = smul.addr %s231, 4
      %s233 = scalar_lea.vmem %s0, %s232
      %p234 = pneg %p37
      %p235 = pneg %p34
      %p236 = scmp.lt.s32.totalorder %s16, 1
      %s237 = scalar_select %p236, %s16, 1
      %s238 = smul.addr %s237, 16
      %s239 = smul.addr %s238, 4
      %s240 = scalar_lea.vmem %s1, %s239
      %p241 = pneg %p63
      %p242 = pneg %p60
      %p243 = scmp.lt.s32.totalorder %s16, 1
      %s244 = scalar_select %p243, %s16, 1
      %s245 = scalar_lea.vmem %s2, %s244
      %p246 = pneg %p89
      %p247 = pneg %p86
      %p248 = scmp.lt.s32.totalorder %s16, 1
      %s249 = scalar_select %p248, %s16, 1
      %s250 = smul.addr %s249, 16
      %s251 = smul.addr %s250, 4
      %s252 = scalar_lea.vmem %s3, %s251
      %p253 = pneg %p115
      %p254 = pneg %p112
      %p255 = scmp.lt.s32.totalorder %s16, 1
      %s256 = scalar_select %p255, %s16, 1
      %s257 = scalar_lea.vmem %s4, %s256
      %p258 = pneg %p141
      %p259 = pneg %p138
      %p260 = pneg %p167
      %p261 = pneg %p164
      %p262 = scmp.lt.s32.totalorder %s16, 1
      %s263 = scalar_select %p262, %s16, 1
      %s264 = smul.addr %s263, 2
      %s265 = scalar_lea.vmem %s5, %s264
      %p266 = scmp.lt.s32.totalorder %s16, 1
      %s267 = scalar_select %p266, %s16, 1
      %s268 = smul.addr %s267, 64
      %s269 = smul.addr %s268, 4
      %s270 = scalar_lea.vmem %s0, %s269
      %p271 = scmp.lt.s32.totalorder %s16, 1
      %s272 = scalar_select %p271, %s16, 1
      %s273 = smul.addr %s272, 16
      %s274 = smul.addr %s273, 4
      %s275 = scalar_lea.vmem %s1, %s274
      %p276 = scmp.lt.s32.totalorder %s16, 1
      %s277 = scalar_select %p276, %s16, 1
      %s278 = scalar_lea.vmem %s2, %s277
      %p279 = scmp.lt.s32.totalorder %s16, 1
      %s280 = scalar_select %p279, %s16, 1
      %s281 = smul.addr %s280, 16
      %s282 = smul.addr %s281, 4
      %s283 = scalar_lea.vmem %s3, %s282
      %p284 = scmp.lt.s32.totalorder %s16, 1
      %s285 = scalar_select %p284, %s16, 1
      %s286 = scalar_lea.vmem %s4, %s285
      %p287 = scmp.lt.s32.totalorder %s16, 1
      %s288 = scalar_select %p287, %s16, 1
      %s289 = smul.addr %s288, 2
      %s290 = scalar_lea.vmem %s5, %s289
      %v292 = vld [vmem:[%s270] sm:$0xf]
      %v293 = vld [vmem:[%s270 + $0x4] sm:$0xf]
      %v294 = vld [vmem:[%s270 + $0x8] sm:$0xf]
      %v295 = vld [vmem:[%s270 + $0xc] sm:$0xf]
      %v296 = vld [vmem:[%s270 + $0x10] sm:$0xf]
      %v297 = vld [vmem:[%s270 + $0x14] sm:$0xf]
      %v298 = vld [vmem:[%s270 + $0x18] sm:$0xf]
      %v299 = vld [vmem:[%s270 + $0x1c] sm:$0xf]
      %v300 = vld [vmem:[%s270 + $0x20] sm:$0xf]
      %v301 = vld [vmem:[%s270 + $0x24] sm:$0xf]
      %v302 = vld [vmem:[%s270 + $0x28] sm:$0xf]
      %v303 = vld [vmem:[%s270 + $0x2c] sm:$0xf]
      %v304 = vld [vmem:[%s270 + $0x30] sm:$0xf]
      %v305 = vld [vmem:[%s270 + $0x34] sm:$0xf]
      %v306 = vld [vmem:[%s270 + $0x38] sm:$0xf]
      %v307 = vld [vmem:[%s270 + $0x3c] sm:$0xf]
      %v308 = vld [vmem:[%s270 + $0x40] sm:$0xf]
      %v309 = vld [vmem:[%s270 + $0x44] sm:$0xf]
      %v310 = vld [vmem:[%s270 + $0x48] sm:$0xf]
      %v311 = vld [vmem:[%s270 + $0x4c] sm:$0xf]
      %v312 = vld [vmem:[%s270 + $0x50] sm:$0xf]
      %v313 = vld [vmem:[%s270 + $0x54] sm:$0xf]
      %v314 = vld [vmem:[%s270 + $0x58] sm:$0xf]
      %v315 = vld [vmem:[%s270 + $0x5c] sm:$0xf]
      %v316 = vld [vmem:[%s270 + $0x60] sm:$0xf]
      %v317 = vld [vmem:[%s270 + $0x64] sm:$0xf]
      %v318 = vld [vmem:[%s270 + $0x68] sm:$0xf]
      %v319 = vld [vmem:[%s270 + $0x6c] sm:$0xf]
      %v320 = vld [vmem:[%s270 + $0x70] sm:$0xf]
      %v321 = vld [vmem:[%s270 + $0x74] sm:$0xf]
      %v322 = vld [vmem:[%s270 + $0x78] sm:$0xf]
      %v323 = vld [vmem:[%s270 + $0x7c] sm:$0xf]
      %v324 = vld [vmem:[%s270 + $0x80] sm:$0xf]
      %v325 = vld [vmem:[%s270 + $0x84] sm:$0xf]
      %v326 = vld [vmem:[%s270 + $0x88] sm:$0xf]
      %v327 = vld [vmem:[%s270 + $0x8c] sm:$0xf]
      %v328 = vld [vmem:[%s270 + $0x90] sm:$0xf]
      %v329 = vld [vmem:[%s270 + $0x94] sm:$0xf]
      %v330 = vld [vmem:[%s270 + $0x98] sm:$0xf]
      %v331 = vld [vmem:[%s270 + $0x9c] sm:$0xf]
      %v332 = vld [vmem:[%s270 + $0xa0] sm:$0xf]
      %v333 = vld [vmem:[%s270 + $0xa4] sm:$0xf]
      %v334 = vld [vmem:[%s270 + $0xa8] sm:$0xf]
      %v335 = vld [vmem:[%s270 + $0xac] sm:$0xf]
      %v336 = vld [vmem:[%s270 + $0xb0] sm:$0xf]
      %v337 = vld [vmem:[%s270 + $0xb4] sm:$0xf]
      %v338 = vld [vmem:[%s270 + $0xb8] sm:$0xf]
      %v339 = vld [vmem:[%s270 + $0xbc] sm:$0xf]
      %v340 = vld [vmem:[%s270 + $0xc0] sm:$0xf]
      %v341 = vld [vmem:[%s270 + $0xc4] sm:$0xf]
      %v342 = vld [vmem:[%s270 + $0xc8] sm:$0xf]
      %v343 = vld [vmem:[%s270 + $0xcc] sm:$0xf]
      %v344 = vld [vmem:[%s270 + $0xd0] sm:$0xf]
      %v345 = vld [vmem:[%s270 + $0xd4] sm:$0xf]
      %v346 = vld [vmem:[%s270 + $0xd8] sm:$0xf]
      %v347 = vld [vmem:[%s270 + $0xdc] sm:$0xf]
      %v348 = vld [vmem:[%s270 + $0xe0] sm:$0xf]
      %v349 = vld [vmem:[%s270 + $0xe4] sm:$0xf]
      %v350 = vld [vmem:[%s270 + $0xe8] sm:$0xf]
      %v351 = vld [vmem:[%s270 + $0xec] sm:$0xf]
      %v352 = vld [vmem:[%s270 + $0xf0] sm:$0xf]
      %v353 = vld [vmem:[%s270 + $0xf4] sm:$0xf]
      %v354 = vld [vmem:[%s270 + $0xf8] sm:$0xf]
      %v355 = vld [vmem:[%s270 + $0xfc] sm:$0xf]
      %v356 = vld [vmem:[%s275] sm:$0xf]
      %v357 = vld [vmem:[%s275 + $0x4] sm:$0xf]
      %v358 = vld [vmem:[%s275 + $0x8] sm:$0xf]
      %v359 = vld [vmem:[%s275 + $0xc] sm:$0xf]
      %v360 = vld [vmem:[%s275 + $0x10] sm:$0xf]
      %v361 = vld [vmem:[%s275 + $0x14] sm:$0xf]
      %v362 = vld [vmem:[%s275 + $0x18] sm:$0xf]
      %v363 = vld [vmem:[%s275 + $0x1c] sm:$0xf]
      %v364 = vld [vmem:[%s275 + $0x20] sm:$0xf]
      %v365 = vld [vmem:[%s275 + $0x24] sm:$0xf]
      %v366 = vld [vmem:[%s275 + $0x28] sm:$0xf]
      %v367 = vld [vmem:[%s275 + $0x2c] sm:$0xf]
      %v368 = vld [vmem:[%s275 + $0x30] sm:$0xf]
      %v369 = vld [vmem:[%s275 + $0x34] sm:$0xf]
      %v370 = vld [vmem:[%s275 + $0x38] sm:$0xf]
      %v371 = vld [vmem:[%s275 + $0x3c] sm:$0xf]
      %v372 = vld [vmem:[%s278] sm:$0x1]
      %v374 = vlaneseq
      %v375 = vshrl.u32 %v374, 7
      %v376 = vsub.s32 0, %v375
      %v377 = vrot.slane %v372, %v376
      %v443 = vunpack.c.l.b16 %v292
      %v444 = vunpack.c.l.b16 %v293
      %v445 = vunpack.c.l.b16 %v294
      %v446 = vunpack.c.l.b16 %v295
      %v447 = vunpack.c.l.b16 %v296
      %v448 = vunpack.c.l.b16 %v297
      %v449 = vunpack.c.l.b16 %v298
      %v450 = vunpack.c.l.b16 %v299
      %v451 = vunpack.c.l.b16 %v300
      %v452 = vunpack.c.l.b16 %v301
      %v453 = vunpack.c.l.b16 %v302
      %v454 = vunpack.c.l.b16 %v303
      %v455 = vunpack.c.l.b16 %v304
      %v456 = vunpack.c.l.b16 %v305
      %v457 = vunpack.c.l.b16 %v306
      %v458 = vunpack.c.l.b16 %v307
      %v459 = vunpack.c.l.b16 %v308
      %v460 = vunpack.c.l.b16 %v309
      %v461 = vunpack.c.l.b16 %v310
      %v462 = vunpack.c.l.b16 %v311
      %v463 = vunpack.c.l.b16 %v312
      %v464 = vunpack.c.l.b16 %v313
      %v465 = vunpack.c.l.b16 %v314
      %v466 = vunpack.c.l.b16 %v315
      %v467 = vunpack.c.l.b16 %v316
      %v468 = vunpack.c.l.b16 %v317
      %v469 = vunpack.c.l.b16 %v318
      %v470 = vunpack.c.l.b16 %v319
      %v471 = vunpack.c.l.b16 %v320
      %v472 = vunpack.c.l.b16 %v321
      %v473 = vunpack.c.l.b16 %v322
      %v474 = vunpack.c.l.b16 %v323
      %v475 = vunpack.c.l.b16 %v324
      %v476 = vunpack.c.l.b16 %v325
      %v477 = vunpack.c.l.b16 %v326
      %v478 = vunpack.c.l.b16 %v327
      %v479 = vunpack.c.l.b16 %v328
      %v480 = vunpack.c.l.b16 %v329
      %v481 = vunpack.c.l.b16 %v330
      %v482 = vunpack.c.l.b16 %v331
      %v483 = vunpack.c.l.b16 %v332
      %v484 = vunpack.c.l.b16 %v333
      %v485 = vunpack.c.l.b16 %v334
      %v486 = vunpack.c.l.b16 %v335
      %v487 = vunpack.c.l.b16 %v336
      %v488 = vunpack.c.l.b16 %v337
      %v489 = vunpack.c.l.b16 %v338
      %v490 = vunpack.c.l.b16 %v339
      %v491 = vunpack.c.l.b16 %v340
      %v492 = vunpack.c.l.b16 %v341
      %v493 = vunpack.c.l.b16 %v342
      %v494 = vunpack.c.l.b16 %v343
      %v495 = vunpack.c.l.b16 %v344
      %v496 = vunpack.c.l.b16 %v345
      %v497 = vunpack.c.l.b16 %v346
      %v498 = vunpack.c.l.b16 %v347
      %v499 = vunpack.c.l.b16 %v348
      %v500 = vunpack.c.l.b16 %v349
      %v501 = vunpack.c.l.b16 %v350
      %v502 = vunpack.c.l.b16 %v351
      %v503 = vunpack.c.l.b16 %v352
      %v504 = vunpack.c.l.b16 %v353
      %v505 = vunpack.c.l.b16 %v354
      %v506 = vunpack.c.l.b16 %v355
      %v507 = vpack.c.b16 %v444, %v443
      %v508 = vpack.c.b16 %v446, %v445
      %v509 = vpack.c.b16 %v448, %v447
      %v510 = vpack.c.b16 %v450, %v449
      %v511 = vpack.c.b16 %v452, %v451
      %v512 = vpack.c.b16 %v454, %v453
      %v513 = vpack.c.b16 %v456, %v455
      %v514 = vpack.c.b16 %v458, %v457
      %v515 = vpack.c.b16 %v460, %v459
      %v516 = vpack.c.b16 %v462, %v461
      %v517 = vpack.c.b16 %v464, %v463
      %v518 = vpack.c.b16 %v466, %v465
      %v519 = vpack.c.b16 %v468, %v467
      %v520 = vpack.c.b16 %v470, %v469
      %v521 = vpack.c.b16 %v472, %v471
      %v522 = vpack.c.b16 %v474, %v473
      %v523 = vpack.c.b16 %v476, %v475
      %v524 = vpack.c.b16 %v478, %v477
      %v525 = vpack.c.b16 %v480, %v479
      %v526 = vpack.c.b16 %v482, %v481
      %v527 = vpack.c.b16 %v484, %v483
      %v528 = vpack.c.b16 %v486, %v485
      %v529 = vpack.c.b16 %v488, %v487
      %v530 = vpack.c.b16 %v490, %v489
      %v531 = vpack.c.b16 %v492, %v491
      %v532 = vpack.c.b16 %v494, %v493
      %v533 = vpack.c.b16 %v496, %v495
      %v534 = vpack.c.b16 %v498, %v497
      %v535 = vpack.c.b16 %v500, %v499
      %v536 = vpack.c.b16 %v502, %v501
      %v537 = vpack.c.b16 %v504, %v503
      %v538 = vpack.c.b16 %v506, %v505
      %v587 = vunpack.c.l.b16 %v356
      %v588 = vunpack.c.l.b16 %v357
      %v589 = vunpack.c.l.b16 %v358
      %v590 = vunpack.c.l.b16 %v359
      %v591 = vunpack.c.l.b16 %v360
      %v592 = vunpack.c.l.b16 %v361
      %v593 = vunpack.c.l.b16 %v362
      %v594 = vunpack.c.l.b16 %v363
      %v595 = vunpack.c.l.b16 %v364
      %v596 = vunpack.c.l.b16 %v365
      %v597 = vunpack.c.l.b16 %v366
      %v598 = vunpack.c.l.b16 %v367
      %v599 = vunpack.c.l.b16 %v368
      %v600 = vunpack.c.l.b16 %v369
      %v601 = vunpack.c.l.b16 %v370
      %v602 = vunpack.c.l.b16 %v371
      %v603 = vpack.c.b16 %v588, %v587
      %v604 = vpack.c.b16 %v590, %v589
      %v605 = vpack.c.b16 %v592, %v591
      %v606 = vpack.c.b16 %v594, %v593
      %v607 = vpack.c.b16 %v596, %v595
      %v608 = vpack.c.b16 %v598, %v597
      %v609 = vpack.c.b16 %v600, %v599
      %v610 = vpack.c.b16 %v602, %v601
      %619 = vmatprep.subr.bf16.mxu0 0
      %620 = vmatpush1.bf16.msra.mxu0 %v610
      %621 = vmatprep.subr.bf16.mxu0 0
      %622 = vmatpush1.bf16.msra.mxu0 %v609
      %623 = vmatprep.subr.bf16.mxu0 0
      %624 = vmatpush1.bf16.msra.mxu0 %v608
      %625 = vmatprep.subr.bf16.mxu0 0
      %626 = vmatpush1.bf16.msra.mxu0 %v607
      %627 = vmatprep.subr.bf16.mxu0 0
      %628 = vmatpush1.bf16.msra.mxu0 %v606
      %629 = vmatprep.subr.bf16.mxu0 0
      %630 = vmatpush1.bf16.msra.mxu0 %v605
      %631 = vmatprep.subr.bf16.mxu0 0
      %632 = vmatpush1.bf16.msra.mxu0 %v604
      %633 = vmatprep.subr.bf16.mxu0 0
      %634 = vmatpush1.bf16.msra.mxu0 %v603
      %635 = vmatprep.subr.bf16.mxu0 0
      %636 = vmatpush2.bf16.msra.mxu0 0
      %637 = vmatprep.subr.bf16.mxu0 0
      %638 = vmatpush2.bf16.msra.mxu0 0
      %639 = vmatprep.subr.bf16.mxu0 0
      %640 = vmatpush2.bf16.msra.mxu0 0
      %641 = vmatprep.subr.bf16.mxu0 0
      %642 = vmatpush2.bf16.msra.mxu0 0
      %643 = vmatprep.subr.bf16.mxu0 0
      %644 = vmatpush2.bf16.msra.mxu0 0
      %645 = vmatprep.subr.bf16.mxu0 0
      %646 = vmatpush2.bf16.msra.mxu0 0
      %647 = vmatprep.subr.bf16.mxu0 0
      %648 = vmatpush2.bf16.msra.mxu0 0
      %649 = vmatprep.subr.bf16.mxu0 0
      %650 = vmatpush2.bf16.msra.mxu0 0
      %651 = vmatprep.mubr.bf16.mxu0 0
      %652 = vmatmul.mubr.bf16.gmra.mxu0 %v507
      %v653 = vpop.f32.mrf.mxu0
      %v654 = vadd.f32 %v377, %v653
      %v655 = vpop.f32.mrf.mxu0
      %v656 = vpop.f32.mrf.mxu0
      %v657 = vadd.f32 %v377, %v656
      %v658 = vpop.f32.mrf.mxu0
      %659 = vmatprep.mubr.bf16.mxu0 0
      %660 = vmatmul.mubr.bf16.gmra.mxu0 %v508
      %v661 = vpop.f32.mrf.mxu0
      %v662 = vadd.f32 %v377, %v661
      %v663 = vpop.f32.mrf.mxu0
      %v664 = vpop.f32.mrf.mxu0
      %v665 = vadd.f32 %v377, %v664
      %v666 = vpop.f32.mrf.mxu0
      %667 = vmatprep.mubr.bf16.mxu0 0
      %668 = vmatmul.mubr.bf16.gmra.mxu0 %v509
      %v669 = vpop.f32.mrf.mxu0
      %v670 = vadd.f32 %v377, %v669
      %v671 = vpop.f32.mrf.mxu0
      %v672 = vpop.f32.mrf.mxu0
      %v673 = vadd.f32 %v377, %v672
      %v674 = vpop.f32.mrf.mxu0
      %675 = vmatprep.mubr.bf16.mxu0 0
      %676 = vmatmul.mubr.bf16.gmra.mxu0 %v510
      %v677 = vpop.f32.mrf.mxu0
      %v678 = vadd.f32 %v377, %v677
      %v679 = vpop.f32.mrf.mxu0
      %v680 = vpop.f32.mrf.mxu0
      %v681 = vadd.f32 %v377, %v680
      %v682 = vpop.f32.mrf.mxu0
      %683 = vmatprep.mubr.bf16.mxu0 0
      %684 = vmatmul.mubr.bf16.gmra.mxu0 %v511
      %v685 = vpop.f32.mrf.mxu0
      %v686 = vadd.f32 %v377, %v685
      %v687 = vpop.f32.mrf.mxu0
      %v688 = vpop.f32.mrf.mxu0
      %v689 = vadd.f32 %v377, %v688
      %v690 = vpop.f32.mrf.mxu0
      %691 = vmatprep.mubr.bf16.mxu0 0
      %692 = vmatmul.mubr.bf16.gmra.mxu0 %v512
      %v693 = vpop.f32.mrf.mxu0
      %v694 = vadd.f32 %v377, %v693
      %v695 = vpop.f32.mrf.mxu0
      %v696 = vpop.f32.mrf.mxu0
      %v697 = vadd.f32 %v377, %v696
      %v698 = vpop.f32.mrf.mxu0
      %699 = vmatprep.mubr.bf16.mxu0 0
      %700 = vmatmul.mubr.bf16.gmra.mxu0 %v513
      %v701 = vpop.f32.mrf.mxu0
      %v702 = vadd.f32 %v377, %v701
      %v703 = vpop.f32.mrf.mxu0
      %v704 = vpop.f32.mrf.mxu0
      %v705 = vadd.f32 %v377, %v704
      %v706 = vpop.f32.mrf.mxu0
      %707 = vmatprep.mubr.bf16.mxu0 0
      %708 = vmatmul.mubr.bf16.gmra.mxu0 %v514
      %v709 = vpop.f32.mrf.mxu0
      %v710 = vadd.f32 %v377, %v709
      %v711 = vpop.f32.mrf.mxu0
      %v712 = vpop.f32.mrf.mxu0
      %v713 = vadd.f32 %v377, %v712
      %v714 = vpop.f32.mrf.mxu0
      %715 = vmatprep.mubr.bf16.mxu0 0
      %716 = vmatmul.mubr.bf16.gmra.mxu0 %v515
      %v717 = vpop.f32.mrf.mxu0
      %v718 = vadd.f32 %v377, %v717
      %v719 = vpop.f32.mrf.mxu0
      %v720 = vpop.f32.mrf.mxu0
      %v721 = vadd.f32 %v377, %v720
      %v722 = vpop.f32.mrf.mxu0
      %723 = vmatprep.mubr.bf16.mxu0 0
      %724 = vmatmul.mubr.bf16.gmra.mxu0 %v516
      %v725 = vpop.f32.mrf.mxu0
      %v726 = vadd.f32 %v377, %v725
      %v727 = vpop.f32.mrf.mxu0
      %v728 = vpop.f32.mrf.mxu0
      %v729 = vadd.f32 %v377, %v728
      %v730 = vpop.f32.mrf.mxu0
      %731 = vmatprep.mubr.bf16.mxu0 0
      %732 = vmatmul.mubr.bf16.gmra.mxu0 %v517
      %v733 = vpop.f32.mrf.mxu0
      %v734 = vadd.f32 %v377, %v733
      %v735 = vpop.f32.mrf.mxu0
      %v736 = vpop.f32.mrf.mxu0
      %v737 = vadd.f32 %v377, %v736
      %v738 = vpop.f32.mrf.mxu0
      %739 = vmatprep.mubr.bf16.mxu0 0
      %740 = vmatmul.mubr.bf16.gmra.mxu0 %v518
      %v741 = vpop.f32.mrf.mxu0
      %v742 = vadd.f32 %v377, %v741
      %v743 = vpop.f32.mrf.mxu0
      %v744 = vpop.f32.mrf.mxu0
      %v745 = vadd.f32 %v377, %v744
      %v746 = vpop.f32.mrf.mxu0
      %747 = vmatprep.mubr.bf16.mxu0 0
      %748 = vmatmul.mubr.bf16.gmra.mxu0 %v519
      %v749 = vpop.f32.mrf.mxu0
      %v750 = vadd.f32 %v377, %v749
      %v751 = vpop.f32.mrf.mxu0
      %v752 = vpop.f32.mrf.mxu0
      %v753 = vadd.f32 %v377, %v752
      %v754 = vpop.f32.mrf.mxu0
      %755 = vmatprep.mubr.bf16.mxu0 0
      %756 = vmatmul.mubr.bf16.gmra.mxu0 %v520
      %v757 = vpop.f32.mrf.mxu0
      %v758 = vadd.f32 %v377, %v757
      %v759 = vpop.f32.mrf.mxu0
      %v760 = vpop.f32.mrf.mxu0
      %v761 = vadd.f32 %v377, %v760
      %v762 = vpop.f32.mrf.mxu0
      %763 = vmatprep.mubr.bf16.mxu0 0
      %764 = vmatmul.mubr.bf16.gmra.mxu0 %v521
      %v765 = vpop.f32.mrf.mxu0
      %v766 = vadd.f32 %v377, %v765
      %v767 = vpop.f32.mrf.mxu0
      %v768 = vpop.f32.mrf.mxu0
      %v769 = vadd.f32 %v377, %v768
      %v770 = vpop.f32.mrf.mxu0
      %771 = vmatprep.mubr.bf16.mxu0 0
      %772 = vmatmul.mubr.bf16.gmra.mxu0 %v522
      %v773 = vpop.f32.mrf.mxu0
      %v774 = vadd.f32 %v377, %v773
      %v775 = vpop.f32.mrf.mxu0
      %v776 = vpop.f32.mrf.mxu0
      %v777 = vadd.f32 %v377, %v776
      %v778 = vpop.f32.mrf.mxu0
      %779 = vmatprep.mubr.bf16.mxu0 0
      %780 = vmatmul.mubr.bf16.gmra.mxu0 %v523
      %v781 = vpop.f32.mrf.mxu0
      %v782 = vadd.f32 %v377, %v781
      %v783 = vpop.f32.mrf.mxu0
      %v784 = vpop.f32.mrf.mxu0
      %v785 = vadd.f32 %v377, %v784
      %v786 = vpop.f32.mrf.mxu0
      %787 = vmatprep.mubr.bf16.mxu0 0
      %788 = vmatmul.mubr.bf16.gmra.mxu0 %v524
      %v789 = vpop.f32.mrf.mxu0
      %v790 = vadd.f32 %v377, %v789
      %v791 = vpop.f32.mrf.mxu0
      %v792 = vpop.f32.mrf.mxu0
      %v793 = vadd.f32 %v377, %v792
      %v794 = vpop.f32.mrf.mxu0
      %795 = vmatprep.mubr.bf16.mxu0 0
      %796 = vmatmul.mubr.bf16.gmra.mxu0 %v525
      %v797 = vpop.f32.mrf.mxu0
      %v798 = vadd.f32 %v377, %v797
      %v799 = vpop.f32.mrf.mxu0
      %v800 = vpop.f32.mrf.mxu0
      %v801 = vadd.f32 %v377, %v800
      %v802 = vpop.f32.mrf.mxu0
      %803 = vmatprep.mubr.bf16.mxu0 0
      %804 = vmatmul.mubr.bf16.gmra.mxu0 %v526
      %v805 = vpop.f32.mrf.mxu0
      %v806 = vadd.f32 %v377, %v805
      %v807 = vpop.f32.mrf.mxu0
      %v808 = vpop.f32.mrf.mxu0
      %v809 = vadd.f32 %v377, %v808
      %v810 = vpop.f32.mrf.mxu0
      %811 = vmatprep.mubr.bf16.mxu0 0
      %812 = vmatmul.mubr.bf16.gmra.mxu0 %v527
      %v813 = vpop.f32.mrf.mxu0
      %v814 = vadd.f32 %v377, %v813
      %v815 = vpop.f32.mrf.mxu0
      %v816 = vpop.f32.mrf.mxu0
      %v817 = vadd.f32 %v377, %v816
      %v818 = vpop.f32.mrf.mxu0
      %819 = vmatprep.mubr.bf16.mxu0 0
      %820 = vmatmul.mubr.bf16.gmra.mxu0 %v528
      %v821 = vpop.f32.mrf.mxu0
      %v822 = vadd.f32 %v377, %v821
      %v823 = vpop.f32.mrf.mxu0
      %v824 = vpop.f32.mrf.mxu0
      %v825 = vadd.f32 %v377, %v824
      %v826 = vpop.f32.mrf.mxu0
      %827 = vmatprep.mubr.bf16.mxu0 0
      %828 = vmatmul.mubr.bf16.gmra.mxu0 %v529
      %v829 = vpop.f32.mrf.mxu0
      %v830 = vadd.f32 %v377, %v829
      %v831 = vpop.f32.mrf.mxu0
      %v832 = vpop.f32.mrf.mxu0
      %v833 = vadd.f32 %v377, %v832
      %v834 = vpop.f32.mrf.mxu0
      %835 = vmatprep.mubr.bf16.mxu0 0
      %836 = vmatmul.mubr.bf16.gmra.mxu0 %v530
      %v837 = vpop.f32.mrf.mxu0
      %v838 = vadd.f32 %v377, %v837
      %v839 = vpop.f32.mrf.mxu0
      %v840 = vpop.f32.mrf.mxu0
      %v841 = vadd.f32 %v377, %v840
      %v842 = vpop.f32.mrf.mxu0
      %843 = vmatprep.mubr.bf16.mxu0 0
      %844 = vmatmul.mubr.bf16.gmra.mxu0 %v531
      %v845 = vpop.f32.mrf.mxu0
      %v846 = vadd.f32 %v377, %v845
      %v847 = vpop.f32.mrf.mxu0
      %v848 = vpop.f32.mrf.mxu0
      %v849 = vadd.f32 %v377, %v848
      %v850 = vpop.f32.mrf.mxu0
      %851 = vmatprep.mubr.bf16.mxu0 0
      %852 = vmatmul.mubr.bf16.gmra.mxu0 %v532
      %v853 = vpop.f32.mrf.mxu0
      %v854 = vadd.f32 %v377, %v853
      %v855 = vpop.f32.mrf.mxu0
      %v856 = vpop.f32.mrf.mxu0
      %v857 = vadd.f32 %v377, %v856
      %v858 = vpop.f32.mrf.mxu0
      %859 = vmatprep.mubr.bf16.mxu0 0
      %860 = vmatmul.mubr.bf16.gmra.mxu0 %v533
      %v861 = vpop.f32.mrf.mxu0
      %v862 = vadd.f32 %v377, %v861
      %v863 = vpop.f32.mrf.mxu0
      %v864 = vpop.f32.mrf.mxu0
      %v865 = vadd.f32 %v377, %v864
      %v866 = vpop.f32.mrf.mxu0
      %867 = vmatprep.mubr.bf16.mxu0 0
      %868 = vmatmul.mubr.bf16.gmra.mxu0 %v534
      %v869 = vpop.f32.mrf.mxu0
      %v870 = vadd.f32 %v377, %v869
      %v871 = vpop.f32.mrf.mxu0
      %v872 = vpop.f32.mrf.mxu0
      %v873 = vadd.f32 %v377, %v872
      %v874 = vpop.f32.mrf.mxu0
      %875 = vmatprep.mubr.bf16.mxu0 0
      %876 = vmatmul.mubr.bf16.gmra.mxu0 %v535
      %v877 = vpop.f32.mrf.mxu0
      %v878 = vadd.f32 %v377, %v877
      %v879 = vpop.f32.mrf.mxu0
      %v880 = vpop.f32.mrf.mxu0
      %v881 = vadd.f32 %v377, %v880
      %v882 = vpop.f32.mrf.mxu0
      %883 = vmatprep.mubr.bf16.mxu0 0
      %884 = vmatmul.mubr.bf16.gmra.mxu0 %v536
      %v885 = vpop.f32.mrf.mxu0
      %v886 = vadd.f32 %v377, %v885
      %v887 = vpop.f32.mrf.mxu0
      %v888 = vpop.f32.mrf.mxu0
      %v889 = vadd.f32 %v377, %v888
      %v890 = vpop.f32.mrf.mxu0
      %891 = vmatprep.mubr.bf16.mxu0 0
      %892 = vmatmul.mubr.bf16.gmra.mxu0 %v537
      %v893 = vpop.f32.mrf.mxu0
      %v894 = vadd.f32 %v377, %v893
      %v895 = vpop.f32.mrf.mxu0
      %v896 = vpop.f32.mrf.mxu0
      %v897 = vadd.f32 %v377, %v896
      %v898 = vpop.f32.mrf.mxu0
      %899 = vmatprep.mubr.bf16.mxu0 0
      %900 = vmatmul.mubr.bf16.gmra.mxu0 %v538
      %v901 = vpop.f32.mrf.mxu0
      %v902 = vadd.f32 %v377, %v901
      %v903 = vpop.f32.mrf.mxu0
      %v904 = vpop.f32.mrf.mxu0
      %v905 = vadd.f32 %v377, %v904
      %v906 = vpop.f32.mrf.mxu0
      %907 = vdwg.mxu0
      %v908 = vmax.f32 %v654, 0.0
      %v909 = vmax.f32 %v657, 0.0
      %v910 = vmax.f32 %v662, 0.0
      %v911 = vmax.f32 %v665, 0.0
      %v912 = vmax.f32 %v670, 0.0
      %v913 = vmax.f32 %v673, 0.0
      %v914 = vmax.f32 %v678, 0.0
      %v915 = vmax.f32 %v681, 0.0
      %v916 = vmax.f32 %v686, 0.0
      %v917 = vmax.f32 %v689, 0.0
      %v918 = vmax.f32 %v694, 0.0
      %v919 = vmax.f32 %v697, 0.0
      %v920 = vmax.f32 %v702, 0.0
      %v921 = vmax.f32 %v705, 0.0
      %v922 = vmax.f32 %v710, 0.0
      %v923 = vmax.f32 %v713, 0.0
      %v924 = vmax.f32 %v718, 0.0
      %v925 = vmax.f32 %v721, 0.0
      %v926 = vmax.f32 %v726, 0.0
      %v927 = vmax.f32 %v729, 0.0
      %v928 = vmax.f32 %v734, 0.0
      %v929 = vmax.f32 %v737, 0.0
      %v930 = vmax.f32 %v742, 0.0
      %v931 = vmax.f32 %v745, 0.0
      %v932 = vmax.f32 %v750, 0.0
      %v933 = vmax.f32 %v753, 0.0
      %v934 = vmax.f32 %v758, 0.0
      %v935 = vmax.f32 %v761, 0.0
      %v936 = vmax.f32 %v766, 0.0
      %v937 = vmax.f32 %v769, 0.0
      %v938 = vmax.f32 %v774, 0.0
      %v939 = vmax.f32 %v777, 0.0
      %v940 = vmax.f32 %v782, 0.0
      %v941 = vmax.f32 %v785, 0.0
      %v942 = vmax.f32 %v790, 0.0
      %v943 = vmax.f32 %v793, 0.0
      %v944 = vmax.f32 %v798, 0.0
      %v945 = vmax.f32 %v801, 0.0
      %v946 = vmax.f32 %v806, 0.0
      %v947 = vmax.f32 %v809, 0.0
      %v948 = vmax.f32 %v814, 0.0
      %v949 = vmax.f32 %v817, 0.0
      %v950 = vmax.f32 %v822, 0.0
      %v951 = vmax.f32 %v825, 0.0
      %v952 = vmax.f32 %v830, 0.0
      %v953 = vmax.f32 %v833, 0.0
      %v954 = vmax.f32 %v838, 0.0
      %v955 = vmax.f32 %v841, 0.0
      %v956 = vmax.f32 %v846, 0.0
      %v957 = vmax.f32 %v849, 0.0
      %v958 = vmax.f32 %v854, 0.0
      %v959 = vmax.f32 %v857, 0.0
      %v960 = vmax.f32 %v862, 0.0
      %v961 = vmax.f32 %v865, 0.0
      %v962 = vmax.f32 %v870, 0.0
      %v963 = vmax.f32 %v873, 0.0
      %v964 = vmax.f32 %v878, 0.0
      %v965 = vmax.f32 %v881, 0.0
      %v966 = vmax.f32 %v886, 0.0
      %v967 = vmax.f32 %v889, 0.0
      %v968 = vmax.f32 %v894, 0.0
      %v969 = vmax.f32 %v897, 0.0
      %v970 = vmax.f32 %v902, 0.0
      %v971 = vmax.f32 %v905, 0.0
      %v972 = vadd.f32 %v908, %v909
      %v973 = vadd.f32 %v972, %v910
      %v974 = vadd.f32 %v973, %v911
      %v975 = vadd.f32 %v974, %v912
      %v976 = vadd.f32 %v975, %v913
      %v977 = vadd.f32 %v976, %v914
      %v978 = vadd.f32 %v977, %v915
      %v979 = vadd.f32 %v978, %v916
      %v980 = vadd.f32 %v979, %v917
      %v981 = vadd.f32 %v980, %v918
      %v982 = vadd.f32 %v981, %v919
      %v983 = vadd.f32 %v982, %v920
      %v984 = vadd.f32 %v983, %v921
      %v985 = vadd.f32 %v984, %v922
      %v986 = vadd.f32 %v985, %v923
      %v987 = vadd.f32 %v986, %v924
      %v988 = vadd.f32 %v987, %v925
      %v989 = vadd.f32 %v988, %v926
      %v990 = vadd.f32 %v989, %v927
      %v991 = vadd.f32 %v990, %v928
      %v992 = vadd.f32 %v991, %v929
      %v993 = vadd.f32 %v992, %v930
      %v994 = vadd.f32 %v993, %v931
      %v995 = vadd.f32 %v994, %v932
      %v996 = vadd.f32 %v995, %v933
      %v997 = vadd.f32 %v996, %v934
      %v998 = vadd.f32 %v997, %v935
      %v999 = vadd.f32 %v998, %v936
      %v1000 = vadd.f32 %v999, %v937
      %v1001 = vadd.f32 %v1000, %v938
      %v1002 = vadd.f32 %v1001, %v939
      %v1003 = vrot.slane %v1002, 4
      %v1004 = vadd.f32 %v1002, %v1003
      %v1005 = vrot.slane %v1004, 2
      %v1006 = vadd.f32 %v1004, %v1005
      %v1007 = vrot.slane %v1006, 1
      %v1008 = vadd.f32 %v1006, %v1007
      %v1009 = vadd.f32 %v940, %v941
      %v1010 = vadd.f32 %v1009, %v942
      %v1011 = vadd.f32 %v1010, %v943
      %v1012 = vadd.f32 %v1011, %v944
      %v1013 = vadd.f32 %v1012, %v945
      %v1014 = vadd.f32 %v1013, %v946
      %v1015 = vadd.f32 %v1014, %v947
      %v1016 = vadd.f32 %v1015, %v948
      %v1017 = vadd.f32 %v1016, %v949
      %v1018 = vadd.f32 %v1017, %v950
      %v1019 = vadd.f32 %v1018, %v951
      %v1020 = vadd.f32 %v1019, %v952
      %v1021 = vadd.f32 %v1020, %v953
      %v1022 = vadd.f32 %v1021, %v954
      %v1023 = vadd.f32 %v1022, %v955
      %v1024 = vadd.f32 %v1023, %v956
      %v1025 = vadd.f32 %v1024, %v957
      %v1026 = vadd.f32 %v1025, %v958
      %v1027 = vadd.f32 %v1026, %v959
      %v1028 = vadd.f32 %v1027, %v960
      %v1029 = vadd.f32 %v1028, %v961
      %v1030 = vadd.f32 %v1029, %v962
      %v1031 = vadd.f32 %v1030, %v963
      %v1032 = vadd.f32 %v1031, %v964
      %v1033 = vadd.f32 %v1032, %v965
      %v1034 = vadd.f32 %v1033, %v966
      %v1035 = vadd.f32 %v1034, %v967
      %v1036 = vadd.f32 %v1035, %v968
      %v1037 = vadd.f32 %v1036, %v969
      %v1038 = vadd.f32 %v1037, %v970
      %v1039 = vadd.f32 %v1038, %v971
      %v1040 = vrot.slane %v1039, 4
      %v1041 = vadd.f32 %v1039, %v1040
      %v1042 = vrot.slane %v1041, 2
      %v1043 = vadd.f32 %v1041, %v1042
      %v1044 = vrot.slane %v1043, 1
      %v1045 = vadd.f32 %v1043, %v1044
      %v1046 = vmul.f32 %v1008, 0.00390625
      %v1047 = vmul.f32 %v1045, 0.00390625
      %v1048 = vpack.c.bf16 %v1046, %v1046
      %v1049 = vpack.c.bf16 %v1047, %v1047
      %v1050 = vld [vmem:[%s283] sm:$0xf]
      %v1051 = vld [vmem:[%s283 + $0x4] sm:$0xf]
      %v1052 = vld [vmem:[%s283 + $0x8] sm:$0xf]
      %v1053 = vld [vmem:[%s283 + $0xc] sm:$0xf]
      %v1054 = vld [vmem:[%s283 + $0x10] sm:$0xf]
      %v1055 = vld [vmem:[%s283 + $0x14] sm:$0xf]
      %v1056 = vld [vmem:[%s283 + $0x18] sm:$0xf]
      %v1057 = vld [vmem:[%s283 + $0x1c] sm:$0xf]
      %v1058 = vld [vmem:[%s283 + $0x20] sm:$0xf]
      %v1059 = vld [vmem:[%s283 + $0x24] sm:$0xf]
      %v1060 = vld [vmem:[%s283 + $0x28] sm:$0xf]
      %v1061 = vld [vmem:[%s283 + $0x2c] sm:$0xf]
      %v1062 = vld [vmem:[%s283 + $0x30] sm:$0xf]
      %v1063 = vld [vmem:[%s283 + $0x34] sm:$0xf]
      %v1064 = vld [vmem:[%s283 + $0x38] sm:$0xf]
      %v1065 = vld [vmem:[%s283 + $0x3c] sm:$0xf]
      %v1066 = vld [vmem:[%s286] sm:$0x1]
      %v1068 = vlaneseq
      %v1069 = vshrl.u32 %v1068, 7
      %v1070 = vsub.s32 0, %v1069
      %v1071 = vrot.slane %v1066, %v1070
      %v1075 = vunpack.c.l.b16 %v1048
      %v1076 = vunpack.c.l.b16 %v1049
      %vm1077 = vcmask 1041409
      %v1078 = vsel %vm1077, %v1076, %v1075
      %v1079 = vpack.c.b16 %v1078, %v1078
      %v1097 = vunpack.c.l.b16 %v1050
      %v1098 = vunpack.c.l.b16 %v1051
      %v1099 = vunpack.c.l.b16 %v1052
      %v1100 = vunpack.c.l.b16 %v1053
      %v1101 = vunpack.c.l.b16 %v1054
      %v1102 = vunpack.c.l.b16 %v1055
      %v1103 = vunpack.c.l.b16 %v1056
      %v1104 = vunpack.c.l.b16 %v1057
      %v1105 = vunpack.c.l.b16 %v1058
      %v1106 = vunpack.c.l.b16 %v1059
      %v1107 = vunpack.c.l.b16 %v1060
      %v1108 = vunpack.c.l.b16 %v1061
      %v1109 = vunpack.c.l.b16 %v1062
      %v1110 = vunpack.c.l.b16 %v1063
      %v1111 = vunpack.c.l.b16 %v1064
      %v1112 = vunpack.c.l.b16 %v1065
      %v1113 = vpack.c.b16 %v1098, %v1097
      %v1114 = vpack.c.b16 %v1100, %v1099
      %v1115 = vpack.c.b16 %v1102, %v1101
      %v1116 = vpack.c.b16 %v1104, %v1103
      %v1117 = vpack.c.b16 %v1106, %v1105
      %v1118 = vpack.c.b16 %v1108, %v1107
      %v1119 = vpack.c.b16 %v1110, %v1109
      %v1120 = vpack.c.b16 %v1112, %v1111
      %1129 = vmatprep.subr.bf16.mxu0 0
      %1130 = vmatpush1.bf16.msra.mxu0 %v1120
      %1131 = vmatprep.subr.bf16.mxu0 0
      %1132 = vmatpush1.bf16.msra.mxu0 %v1119
      %1133 = vmatprep.subr.bf16.mxu0 0
      %1134 = vmatpush1.bf16.msra.mxu0 %v1118
      %1135 = vmatprep.subr.bf16.mxu0 0
      %1136 = vmatpush1.bf16.msra.mxu0 %v1117
      %1137 = vmatprep.subr.bf16.mxu0 0
      %1138 = vmatpush1.bf16.msra.mxu0 %v1116
      %1139 = vmatprep.subr.bf16.mxu0 0
      %1140 = vmatpush1.bf16.msra.mxu0 %v1115
      %1141 = vmatprep.subr.bf16.mxu0 0
      %1142 = vmatpush1.bf16.msra.mxu0 %v1114
      %1143 = vmatprep.subr.bf16.mxu0 0
      %1144 = vmatpush1.bf16.msra.mxu0 %v1113
      %1145 = vmatprep.subr.bf16.mxu0 0
      %1146 = vmatpush2.bf16.msra.mxu0 0
      %1147 = vmatprep.subr.bf16.mxu0 0
      %1148 = vmatpush2.bf16.msra.mxu0 0
      %1149 = vmatprep.subr.bf16.mxu0 0
      %1150 = vmatpush2.bf16.msra.mxu0 0
      %1151 = vmatprep.subr.bf16.mxu0 0
      %1152 = vmatpush2.bf16.msra.mxu0 0
      %1153 = vmatprep.subr.bf16.mxu0 0
      %1154 = vmatpush2.bf16.msra.mxu0 0
      %1155 = vmatprep.subr.bf16.mxu0 0
      %1156 = vmatpush2.bf16.msra.mxu0 0
      %1157 = vmatprep.subr.bf16.mxu0 0
      %1158 = vmatpush2.bf16.msra.mxu0 0
      %1159 = vmatprep.subr.bf16.mxu0 0
      %1160 = vmatpush2.bf16.msra.mxu0 0
      %1161 = vmatprep.mubr.bf16.mxu0 0
      %1162 = vmatmul.mubr.bf16.gmra.mxu0 %v1079
      %v1163 = vpop.f32.mrf.mxu0
      %v1164 = vadd.f32 %v1071, %v1163
      %v1165 = vpop.f32.mrf.mxu0
      %v1166 = vpop.f32.mrf.mxu0
      %v1167 = vpop.f32.mrf.mxu0
      %1168 = vdwg.mxu0
      %v1169 = vmul.f32 %v1164, %v1164
      %vm1170 = vcmask 1041408
      %v1171 = vsel %vm1170, %v1169, 0.0
      %1172 = vadd.xlane.f32.xlu0 %v1171
      %v1173 = vpop.xlane.xlu0 %1172
      %v1174 = vmax.f32 %v1173, 1e-24
      %v1175 = vrsqrt.pop %v1174
      %v1176 = vmul.f32 %v1164, %v1175
      %1177 = vst [vmem:[%s290] sm:$0x3] %v1176
      %p1178 = scmp.lt.s32.totalorder %s16, 1
      %s1179 = scalar_select %p1178, %s16, 1
      %s1180 = smul.addr %s1179, 2
      %s1181 = scalar_lea.vmem %s5, %s1180
      // Predicated region
      $region41: #{moco_forward.1} parent=39 // pred_check
        %p1182 = pneg %p164
      $region42: #{moco_forward.1} parent=39 // pred_check_branch
        %1184 = sbr.rel (%p1182) target = $region44
      $region43: #{moco_forward.1} parent=39 // pred_region
        _
      $region44: #{moco_forward.1} parent=39 // pred_fallthru
        _
    $region40: #{moco_forward.1} parent=5 // pred_fallthru
      _
    %p1185 = scmp.le.s32.totalorder 2, %s11
    // Predicated region
    $region45: #{moco_forward.1} parent=5 // pred_check
      %p1186 = pneg %p1185
    $region46: #{moco_forward.1} parent=5 // pred_check_branch
      %1188 = sbr.rel (%p1186) target = $region48
    $region47: #{moco_forward.1} parent=5 // pred_region
      %s1189 = ssub.s32 %s11, 2
      // Predicated region
      $region49: #{moco_forward.1} parent=47 // pred_check
        %p1190 = pneg %p170
      $region50: #{moco_forward.1} parent=47 // pred_check_branch
        %1192 = sbr.rel (%p1190) target = $region52
      $region51: #{moco_forward.1} parent=47 // pred_region
        %p1193 = scmp.lt.s32.totalorder %s17, 1
        %s1194 = scalar_select %p1193, %s17, 1
        %s1195 = smul.addr %s1194, 2
        %s1196 = scalar_lea.vmem %s5, %s1195
      $region52: #{moco_forward.1} parent=47 // pred_fallthru
        _
    $region48: #{moco_forward.1} parent=5 // pred_fallthru
      _
  $region6: #{moco_forward.1} parent=0 // loop_footer
    %s15 = sadd.s32 1, %s11
  $region7: #{moco_forward.1} parent=0 // loop_footer_branch
    %10 = sbr.rel target = $region3
  $region8: #{moco_forward.1} parent=0 // loop_exit
    _

</llo_original>
